<compile_context>
chip_gen: v5e
topology: v5e:2x2
jax: 0.10.0
libtpu: 0.0.40
codegen_flags: <defaults>
</compile_context>

<pallas_src>
import functools

import jax
import jax.numpy as jnp
from jax.experimental import pallas as pl
from jax.experimental.pallas import tpu as pltpu


def _round_up(x, n):
    return ((x + n - 1) // n) * n


@functools.lru_cache(maxsize=1)
def _vmem_capacity_bytes():
    try:
        info = pltpu.get_tpu_info()
        cap = getattr(info, "vmem_capacity_bytes", None)
        if cap:
            return int(cap)
    except Exception:
        pass
    return 64 * 1024 * 1024  # conservative default (v7x per-core VMEM)


# ---------------------------------------------------------------------------
# Kernels
# ---------------------------------------------------------------------------

def _tucker_kernel(x_ref, p1c_ref, p2_ref, o_ref):
    # Single pass over in_features.
    #   x_ref:   (tm, in_features)    native dtype (cast to bf16 in-kernel)
    #   p1c_ref: (in_features, rank)  bf16  (first_projection @ core, folded)
    #   p2_ref:  (rank, out_pad)      bf16
    #   o_ref:   (tm, out_pad)        out_dtype
    t = jnp.dot(x_ref[...].astype(jnp.bfloat16), p1c_ref[...],
                preferred_element_type=jnp.float32)
    # NOTE: t is rounded to bf16 before the tiny-K second matmul; the MXU
    # still accumulates in f32, so the extra error is ~bf16-eps relative.
    out = jnp.dot(t.astype(jnp.bfloat16), p2_ref[...],
                  preferred_element_type=jnp.float32)
    o_ref[...] = out.astype(o_ref.dtype)


def _tucker_kernel_ktiled(x_ref, p1c_ref, p2_ref, o_ref, acc_ref):
    # K-tiled variant for very large in_features.
    #   x_ref: (tm, tk), p1c_ref: (tk, rank), acc_ref: (tm, rank) f32 scratch.
    k = pl.program_id(1)

    @pl.when(k == 0)
    def _():
        acc_ref[...] = jnp.zeros_like(acc_ref)

    acc_ref[...] += jnp.dot(x_ref[...].astype(jnp.bfloat16), p1c_ref[...],
                            preferred_element_type=jnp.float32)

    @pl.when(k == pl.num_programs(1) - 1)
    def _():
        out = jnp.dot(acc_ref[...].astype(jnp.bfloat16), p2_ref[...],
                      preferred_element_type=jnp.float32)
        o_ref[...] = out.astype(o_ref.dtype)


# ---------------------------------------------------------------------------
# Wrapper
# ---------------------------------------------------------------------------

@functools.partial(jax.jit, static_argnames=("tm", "out_dtype"))
def tucker_linear(x, first_projection, core, last_projection, *,
                  tm=None, out_dtype=None):
    """Pallas implementation of TuckerLinear.forward.

    x: (..., in_features) floating dtype
    returns: (..., out_features) in `out_dtype` (default: x.dtype)
    """
    if not jnp.issubdtype(x.dtype, jnp.floating):
        raise TypeError(f"tucker_linear expects a floating input, got {x.dtype}")
    if out_dtype is None:
        out_dtype = x.dtype
    out_dtype = jnp.dtype(out_dtype)
    if not jnp.issubdtype(out_dtype, jnp.floating):
        raise TypeError(f"out_dtype must be floating, got {out_dtype}")

    in_features = x.shape[-1]
    rank = first_projection.shape[1]
    out_features = last_projection.shape[1]
    x_itemsize = jnp.dtype(x.dtype).itemsize
    out_itemsize = out_dtype.itemsize

    lead_shape = x.shape[:-1]
    m = 1
    for d in lead_shape:
        m *= d
    x2 = x.reshape(m, in_features)

    # Fold the tiny (rank x rank) core into the first projection once, in f32,
    # outside the kernel (removes one MXU issue per tile and one VMEM buffer).
    p1c = jnp.dot(first_projection.astype(jnp.float32),
                  core.astype(jnp.float32)).astype(jnp.bfloat16)

    # Lane-dense output: pad out_features up to a multiple of 128 (zero cols)
    # so stores are unmasked vst's; extra columns are sliced off only when
    # out_features is not already lane-aligned.
    out_pad = _round_up(out_features, 128)
    p2 = last_projection.astype(jnp.bfloat16)
    if out_pad != out_features:
        p2 = jnp.pad(p2, ((0, 0), (0, out_pad - out_features)))

    # --- optional K tiling (only for very large in_features) ----------------
    tk = in_features
    k_tiled = False
    if in_features >= 8192:
        for cand in (4096, 2048, 1024):
            if in_features % cand == 0:
                tk = cand
                k_tiled = True
                break

    # --- row-tile selection under a generation-aware VMEM budget ------------
    capacity = _vmem_capacity_bytes()
    budget = int(capacity * 0.65)

    def vmem_need(tm_):
        return (2 * tm_ * tk * x_itemsize               # x blocks (dbl-buf)
                + 2 * tm_ * out_pad * out_itemsize       # out blocks (dbl-buf)
                + 2 * (tk * rank + rank * out_pad) * 2   # bf16 weights (dbl-buf)
                + tm_ * tk * 2                           # in-kernel bf16 x cast
                + tm_ * rank * 10                        # f32 dot1 + bf16 + f32 acc
                + tm_ * out_pad * 4)                     # f32 dot2 staging

    if tm is None:
        tm = 128
        for cand in (2048, 1024, 512, 256, 128):
            if vmem_need(cand) <= budget:
                tm = cand
                break
        # Don't over-size tiles for tiny batches.
        tm = min(tm, _round_up(m, 128))
        # Keep >= 2 row tiles so the "parallel" axis can be split across the
        # two v7x TensorCores.
        if m >= 256:
            tm = min(tm, _round_up(pl.cdiv(m, 2), 128))
        tm = max(tm, 128)

    need = vmem_need(tm)
    vmem_limit = max(32 * 1024 * 1024, min(need + need // 2, capacity))

    num_row_tiles = pl.cdiv(m, tm)

    flops = 2 * m * (in_features * rank + rank * out_pad)
    bytes_accessed = (m * in_features * x_itemsize
                      + m * out_pad * out_itemsize
                      + (in_features * rank + rank * out_pad) * 2)
    cost = pl.CostEstimate(flops=flops, transcendentals=0,
                           bytes_accessed=bytes_accessed)

    if not k_tiled:
        grid_spec = pltpu.PrefetchScalarGridSpec(
            num_scalar_prefetch=0,
            grid=(num_row_tiles,),
            in_specs=[
                pl.BlockSpec((tm, in_features), lambda i: (i, 0)),
                pl.BlockSpec((in_features, rank), lambda i: (0, 0)),
                pl.BlockSpec((rank, out_pad), lambda i: (0, 0)),
            ],
            out_specs=pl.BlockSpec((tm, out_pad), lambda i: (i, 0)),
        )
        kernel = _tucker_kernel
        dim_sem = ("parallel",)
    else:
        grid_spec = pltpu.PrefetchScalarGridSpec(
            num_scalar_prefetch=0,
            grid=(num_row_tiles, in_features // tk),
            in_specs=[
                pl.BlockSpec((tm, tk), lambda i, k: (i, k)),
                pl.BlockSpec((tk, rank), lambda i, k: (k, 0)),
                pl.BlockSpec((rank, out_pad), lambda i, k: (0, 0)),
            ],
            out_specs=pl.BlockSpec((tm, out_pad), lambda i, k: (i, 0)),
            scratch_shapes=[pltpu.VMEM((tm, rank), jnp.float32)],
        )
        kernel = _tucker_kernel_ktiled
        dim_sem = ("parallel", "arbitrary")

    out2 = pl.pallas_call(
        kernel,
        out_shape=jax.ShapeDtypeStruct((m, out_pad), out_dtype),
        grid_spec=grid_spec,
        compiler_params=pltpu.CompilerParams(
            dimension_semantics=dim_sem,
            vmem_limit_bytes=vmem_limit,
        ),
        cost_estimate=cost,
    )(x2, p1c, p2)

    if out_pad != out_features:
        out2 = out2[:, :out_features]
    return out2.reshape(*lead_shape, out_features)


def tucker_linear_ref(x, p1, c, p2):
    return jnp.matmul(jnp.matmul(jnp.matmul(x, p1), c), p2)


if __name__ == "__main__":
    # Small, deterministic setup (exercises the ragged last row tile).
    in_features = 32
    out_features = 32
    rank = 8
    batch, seq = 2, 8  # flattened rows = 16

    key = jax.random.PRNGKey(0)
    kx, kp1, kc, kp2 = jax.random.split(key, 4)

    x = jax.random.normal(kx, (batch, seq, in_features), dtype=jnp.float32)
    # Deterministic synthetic Tucker factors (no checkpoint load).
    first_projection = jax.random.normal(
        kp1, (in_features, rank), dtype=jnp.float32) * 0.1
    core = jax.random.normal(kc, (rank, rank), dtype=jnp.float32) * 0.1
    last_projection = jax.random.normal(
        kp2, (rank, out_features), dtype=jnp.float32) * 0.1

    out = tucker_linear(x, first_projection, core, last_projection)
    out = jax.block_until_ready(out)

    ref = tucker_linear_ref(x, first_projection, core, last_projection)
    assert out.shape == (batch, seq, out_features)
    # bf16 compute inside the kernel vs f32 reference -> relaxed tolerance.
    assert jnp.allclose(out, ref, atol=1e-2, rtol=2e-2), "mismatch vs reference"

    print("KERNEL_OK")
</pallas_src>

<mosaic_0001>
module attributes {stable_mosaic.version = 11 : i64} {
  func.func @_tucker_kernel(%arg0: i32, %arg1: memref<128x32xf32, #tpu.memory_space<vmem>>, %arg2: memref<32x8xbf16, #tpu.memory_space<vmem>>, %arg3: memref<8x128xbf16, #tpu.memory_space<vmem>>, %arg4: memref<128x128xf32, #tpu.memory_space<vmem>>) attributes {dimension_semantics = [#tpu.dimension_semantics<parallel>], iteration_bounds = array<i64: 1>, scalar_prefetch = 0 : i64, scratch_operands = 0 : i64, tpu.core_type = #tpu.core_type<tc>, window_params = [{transform_indices = @transform_0, window_bounds = array<i64: 128, 32>}, {pipeline_mode = #tpu.pipeline_mode<synchronous>, transform_indices = @transform_1, window_bounds = array<i64: 32, 8>}, {pipeline_mode = #tpu.pipeline_mode<synchronous>, transform_indices = @transform_2, window_bounds = array<i64: 8, 128>}, {transform_indices = @transform_3, window_bounds = array<i64: 128, 128>}]} {
    %c0 = arith.constant 0 : index
    %c0_0 = arith.constant 0 : index
    %0 = vector.load %arg1[%c0, %c0_0] : memref<128x32xf32, #tpu.memory_space<vmem>>, vector<128x32xf32>
    %1 = arith.truncf %0 : vector<128x32xf32> to vector<128x32xbf16>
    %c0_1 = arith.constant 0 : index
    %c0_2 = arith.constant 0 : index
    %2 = vector.load %arg2[%c0_1, %c0_2] : memref<32x8xbf16, #tpu.memory_space<vmem>>, vector<32x8xbf16>
    %cst = arith.constant dense<0.000000e+00> : vector<128x8xf32>
    %3 = tpu.matmul %1, %2, %cst {dimension_numbers = #tpu.dot_dimension_numbers<[1], [0], [0], [1], [0, 0, 1, 1], [], []>} : vector<128x32xbf16>, vector<32x8xbf16>, vector<128x8xf32> -> vector<128x8xf32>
    %4 = arith.truncf %3 : vector<128x8xf32> to vector<128x8xbf16>
    %c0_3 = arith.constant 0 : index
    %c0_4 = arith.constant 0 : index
    %5 = vector.load %arg3[%c0_3, %c0_4] : memref<8x128xbf16, #tpu.memory_space<vmem>>, vector<8x128xbf16>
    %cst_5 = arith.constant dense<0.000000e+00> : vector<128x128xf32>
    %6 = tpu.matmul %4, %5, %cst_5 {dimension_numbers = #tpu.dot_dimension_numbers<[1], [0], [0], [1], [0, 0, 1, 1], [], []>} : vector<128x8xbf16>, vector<8x128xbf16>, vector<128x128xf32> -> vector<128x128xf32>
    %c0_6 = arith.constant 0 : index
    %c0_7 = arith.constant 0 : index
    %7 = vector.load %arg4[%c0_6, %c0_7] : memref<128x128xf32, #tpu.memory_space<vmem>>, vector<128x128xf32>
    tpu.vector_store %arg4[%c0_6, %c0_7], %6 {strides = array<i32>} : memref<128x128xf32, #tpu.memory_space<vmem>>, vector<128x128xf32>,
    return
  }
  func.func @transform_0(%arg0: i32) -> (i32, i32) {
    %c0_i32 = arith.constant 0 : i32
    %c0_i32_0 = arith.constant 0 : i32
    return %arg0, %c0_i32 : i32, i32
  }
  func.func @transform_1(%arg0: i32) -> (i32, i32) {
    %c0_i32 = arith.constant 0 : i32
    %c0_i32_0 = arith.constant 0 : i32
    %c0_i32_1 = arith.constant 0 : i32
    return %c0_i32, %c0_i32_0 : i32, i32
  }
  func.func @transform_2(%arg0: i32) -> (i32, i32) {
    %c0_i32 = arith.constant 0 : i32
    %c0_i32_0 = arith.constant 0 : i32
    %c0_i32_1 = arith.constant 0 : i32
    return %c0_i32, %c0_i32_0 : i32, i32
  }
  func.func @transform_3(%arg0: i32) -> (i32, i32) {
    %c0_i32 = arith.constant 0 : i32
    %c0_i32_0 = arith.constant 0 : i32
    return %arg0, %c0_i32 : i32, i32
  }
}

</mosaic_0001>

<llo_original>
// kernel: tucker_linear.1
$region0: #{tucker_linear.1}
  #allocation0 [shape = 'u32[]', space=smem, size = 0x4, offset = 0x4, fixed_abs, tag = 'smem constant byte address 0x4 - core index']
  #allocation1 [shape = 'u32[72,128]{1,0:T(1,128)}', space=vmem, size = 0x9000, scoped, tag = 'internal scratch']
  %s0 = inlined_call_operand.vmem [shape: f32[16,32], index: 0, kind: input, shape index: {}]
  %s1 = inlined_call_operand.vmem [shape: bf16[32,8], index: 1, kind: input, shape index: {}]
  %s2 = inlined_call_operand.vmem [shape: bf16[8,128], index: 2, kind: input, shape index: {}]
  %s3 = inlined_call_operand.vmem [shape: f32[16,128], index: 3, kind: output, shape index: {}]
  %s4 = sld [smem:[#allocation0]]
  $region56: #{tucker_linear.1} parent=0
    _
  %s6 = ssub.s32 1, %s4
  %s7 = scalar_select 0, %s6, %s4
  $region1: #{tucker_linear.1} parent=0
    #allocation2 [shape = 'u8[65536]{0}', space=vmem, size = 0x10000, scoped, tag = 'output window, operand 0, single buffered']
    // Predicated region
    $region2: #{tucker_linear.1} parent=1 // pred_check
      _
    $region3: #{tucker_linear.1} parent=1 // pred_check_branch
      %9 = sbr.rel (0) target = $region5
    $region4: #{tucker_linear.1} parent=1 // pred_region
      _
    $region5: #{tucker_linear.1} parent=1 // pred_fallthru
      _
    // Predicated region
    $region6: #{tucker_linear.1} parent=1 // pred_check
      _
    $region7: #{tucker_linear.1} parent=1 // pred_check_branch
      %11 = sbr.rel (0) target = $region9
    $region8: #{tucker_linear.1} parent=1 // pred_region
      _
    $region9: #{tucker_linear.1} parent=1 // pred_fallthru
      _
    // Predicated region
    $region10: #{tucker_linear.1} parent=1 // pred_check
      _
    $region11: #{tucker_linear.1} parent=1 // pred_check_branch
      %13 = sbr.rel (0) target = $region13
    $region12: #{tucker_linear.1} parent=1 // pred_region
      _
    $region13: #{tucker_linear.1} parent=1 // pred_fallthru
      _
    %v15 = vld [vmem:[%s0] sm:$0xff]
    %v16 = vld [vmem:[%s0 + $0x8] sm:$0xff]
    %v17 = vld [vmem:[%s0 + $0x10] sm:$0xff]
    %v18 = vld [vmem:[%s0 + $0x18] sm:$0xff]
    %v19 = vld [vmem:[%s0 + $0x20] sm:$0xff]
    %v20 = vld [vmem:[%s0 + $0x28] sm:$0xff]
    %v21 = vld [vmem:[%s0 + $0x30] sm:$0xff]
    %v22 = vld [vmem:[%s0 + $0x38] sm:$0xff]
    %v23 = vld [vmem:[%s0 + $0x40] sm:$0xff]
    %v24 = vld [vmem:[%s0 + $0x48] sm:$0xff]
    %v25 = vld [vmem:[%s0 + $0x50] sm:$0xff]
    %v26 = vld [vmem:[%s0 + $0x58] sm:$0xff]
    %v27 = vld [vmem:[%s0 + $0x60] sm:$0xff]
    %v28 = vld [vmem:[%s0 + $0x68] sm:$0xff]
    %v29 = vld [vmem:[%s0 + $0x70] sm:$0xff]
    %v30 = vld [vmem:[%s0 + $0x78] sm:$0xff]
    %v31 = vpack.c.bf16 %v16, %v15
    %v32 = vpack.c.bf16 %v18, %v17
    %v33 = vpack.c.bf16 %v20, %v19
    %v34 = vpack.c.bf16 %v22, %v21
    %v35 = vpack.c.bf16 %v24, %v23
    %v36 = vpack.c.bf16 %v26, %v25
    %v37 = vpack.c.bf16 %v28, %v27
    %v38 = vpack.c.bf16 %v30, %v29
    %v39 = vld [vmem:[%s1] sm:$0xf]
    %v40 = vld [vmem:[%s1 + $0x4] sm:$0xf]
    %v41 = vld [vmem:[%s1 + $0x8] sm:$0xf]
    %v42 = vld [vmem:[%s1 + $0xc] sm:$0xf]
    %v47 = vunpack.c.l.b16 %v39
    %v48 = vunpack.c.l.b16 %v40
    %v49 = vunpack.c.l.b16 %v41
    %v50 = vunpack.c.l.b16 %v42
    %v51 = vpack.c.b16 %v48, %v47
    %v52 = vpack.c.b16 %v50, %v49
    %vm55 = vcmask 261120
    %v57 = vsel %vm55, %v31, 0
    %v60 = vsel %vm55, %v32, 0
    %v63 = vsel %vm55, %v33, 0
    %v66 = vsel %vm55, %v34, 0
    %v69 = vsel %vm55, %v35, 0
    %v72 = vsel %vm55, %v36, 0
    %v75 = vsel %vm55, %v37, 0
    %v78 = vsel %vm55, %v38, 0
    %80 = vmatpush.bf16.msra.mxu0 0
    %81 = vmatpush.bf16.msra.mxu0 0
    %82 = vmatpush.bf16.msra.mxu0 0
    %83 = vmatpush.bf16.msra.mxu0 0
    %84 = vmatpush.bf16.msra.mxu0 0
    %85 = vmatpush.bf16.msra.mxu0 0
    %86 = vmatpush.bf16.msra.mxu0 %v52
    %87 = vmatpush.bf16.msra.mxu0 %v51
    %88 = vmatmul.bf16.gmra.mxu0 %v57
    %v89 = vpop.f32.mrf.mxu0
    %v90 = vadd.f32 0.0, %v89
    %v91 = vpop.f32.mrf.mxu0
    %v92 = vadd.f32 0.0, %v91
    %93 = vmatmul.bf16.gmra.mxu0 %v60
    %v94 = vpop.f32.mrf.mxu0
    %v95 = vadd.f32 0.0, %v94
    %v96 = vpop.f32.mrf.mxu0
    %v97 = vadd.f32 0.0, %v96
    %98 = vmatmul.bf16.gmra.mxu0 %v63
    %v99 = vpop.f32.mrf.mxu0
    %v100 = vadd.f32 0.0, %v99
    %v101 = vpop.f32.mrf.mxu0
    %v102 = vadd.f32 0.0, %v101
    %103 = vmatmul.bf16.gmra.mxu0 %v66
    %v104 = vpop.f32.mrf.mxu0
    %v105 = vadd.f32 0.0, %v104
    %v106 = vpop.f32.mrf.mxu0
    %v107 = vadd.f32 0.0, %v106
    %108 = vmatmul.bf16.gmra.mxu0 %v69
    %v109 = vpop.f32.mrf.mxu0
    %v110 = vadd.f32 0.0, %v109
    %v111 = vpop.f32.mrf.mxu0
    %v112 = vadd.f32 0.0, %v111
    %113 = vmatmul.bf16.gmra.mxu0 %v72
    %v114 = vpop.f32.mrf.mxu0
    %v115 = vadd.f32 0.0, %v114
    %v116 = vpop.f32.mrf.mxu0
    %v117 = vadd.f32 0.0, %v116
    %118 = vmatmul.bf16.gmra.mxu0 %v75
    %v119 = vpop.f32.mrf.mxu0
    %v120 = vadd.f32 0.0, %v119
    %v121 = vpop.f32.mrf.mxu0
    %v122 = vadd.f32 0.0, %v121
    %123 = vmatmul.bf16.gmra.mxu0 %v78
    %v124 = vpop.f32.mrf.mxu0
    %v125 = vadd.f32 0.0, %v124
    %v126 = vpop.f32.mrf.mxu0
    %v127 = vadd.f32 0.0, %v126
    %128 = vdwg.mxu0
    %v129 = vpack.c.bf16 %v92, %v90
    %v130 = vpack.c.bf16 %v97, %v95
    %v131 = vpack.c.bf16 %v102, %v100
    %v132 = vpack.c.bf16 %v107, %v105
    %v133 = vpack.c.bf16 %v112, %v110
    %v134 = vpack.c.bf16 %v117, %v115
    %v135 = vpack.c.bf16 %v122, %v120
    %v136 = vpack.c.bf16 %v127, %v125
    %v137 = vld [vmem:[%s2] sm:$0xf]
    %vm138 = vcmask 64512
    %v140 = vsel %vm138, %v129, 0
    %v143 = vsel %vm138, %v130, 0
    %v146 = vsel %vm138, %v131, 0
    %v149 = vsel %vm138, %v132, 0
    %v152 = vsel %vm138, %v133, 0
    %v155 = vsel %vm138, %v134, 0
    %v158 = vsel %vm138, %v135, 0
    %v161 = vsel %vm138, %v136, 0
    %vm163 = vcmask 1043456
    %v165 = vsel %vm163, %v137, 0
    %167 = vmatpush.bf16.msra.mxu0 0
    %168 = vmatpush.bf16.msra.mxu0 0
    %169 = vmatpush.bf16.msra.mxu0 0
    %170 = vmatpush.bf16.msra.mxu0 0
    %171 = vmatpush.bf16.msra.mxu0 0
    %172 = vmatpush.bf16.msra.mxu0 0
    %173 = vmatpush.bf16.msra.mxu0 0
    %174 = vmatpush.bf16.msra.mxu0 %v165
    %175 = vmatmul.bf16.gmra.mxu0 %v140
    %v176 = vpop.f32.mrf.mxu0
    %v177 = vadd.f32 0.0, %v176
    %v178 = vpop.f32.mrf.mxu0
    %v179 = vadd.f32 0.0, %v178
    %180 = vmatmul.bf16.gmra.mxu0 %v143
    %v181 = vpop.f32.mrf.mxu0
    %v182 = vadd.f32 0.0, %v181
    %v183 = vpop.f32.mrf.mxu0
    %v184 = vadd.f32 0.0, %v183
    %185 = vmatmul.bf16.gmra.mxu0 %v146
    %v186 = vpop.f32.mrf.mxu0
    %v187 = vadd.f32 0.0, %v186
    %v188 = vpop.f32.mrf.mxu0
    %v189 = vadd.f32 0.0, %v188
    %190 = vmatmul.bf16.gmra.mxu0 %v149
    %v191 = vpop.f32.mrf.mxu0
    %v192 = vadd.f32 0.0, %v191
    %v193 = vpop.f32.mrf.mxu0
    %v194 = vadd.f32 0.0, %v193
    %195 = vmatmul.bf16.gmra.mxu0 %v152
    %v196 = vpop.f32.mrf.mxu0
    %v197 = vadd.f32 0.0, %v196
    %v198 = vpop.f32.mrf.mxu0
    %v199 = vadd.f32 0.0, %v198
    %200 = vmatmul.bf16.gmra.mxu0 %v155
    %v201 = vpop.f32.mrf.mxu0
    %v202 = vadd.f32 0.0, %v201
    %v203 = vpop.f32.mrf.mxu0
    %v204 = vadd.f32 0.0, %v203
    %205 = vmatmul.bf16.gmra.mxu0 %v158
    %v206 = vpop.f32.mrf.mxu0
    %v207 = vadd.f32 0.0, %v206
    %v208 = vpop.f32.mrf.mxu0
    %v209 = vadd.f32 0.0, %v208
    %210 = vmatmul.bf16.gmra.mxu0 %v161
    %v211 = vpop.f32.mrf.mxu0
    %v212 = vadd.f32 0.0, %v211
    %v213 = vpop.f32.mrf.mxu0
    %v214 = vadd.f32 0.0, %v213
    %215 = vdwg.mxu0
    %216 = vst [vmem:[#allocation2] sm:$0xff] %v177
    %217 = vst [vmem:[#allocation2 + $0x8] sm:$0xff] %v179
    %218 = vst [vmem:[#allocation2 + $0x10] sm:$0xff] %v182
    %219 = vst [vmem:[#allocation2 + $0x18] sm:$0xff] %v184
    %220 = vst [vmem:[#allocation2 + $0x20] sm:$0xff] %v187
    %221 = vst [vmem:[#allocation2 + $0x28] sm:$0xff] %v189
    %222 = vst [vmem:[#allocation2 + $0x30] sm:$0xff] %v192
    %223 = vst [vmem:[#allocation2 + $0x38] sm:$0xff] %v194
    %224 = vst [vmem:[#allocation2 + $0x40] sm:$0xff] %v197
    %225 = vst [vmem:[#allocation2 + $0x48] sm:$0xff] %v199
    %226 = vst [vmem:[#allocation2 + $0x50] sm:$0xff] %v202
    %227 = vst [vmem:[#allocation2 + $0x58] sm:$0xff] %v204
    %228 = vst [vmem:[#allocation2 + $0x60] sm:$0xff] %v207
    %229 = vst [vmem:[#allocation2 + $0x68] sm:$0xff] %v209
    %230 = vst [vmem:[#allocation2 + $0x70] sm:$0xff] %v212
    %231 = vst [vmem:[#allocation2 + $0x78] sm:$0xff] %v214
    // Predicated region
    $region14: #{tucker_linear.1} parent=1 // pred_check
      _
    $region15: #{tucker_linear.1} parent=1 // pred_check_branch
      %233 = sbr.rel (0) target = $region17
    $region16: #{tucker_linear.1} parent=1 // pred_region
      // Predicated region
      $region18: #{tucker_linear.1} parent=16 // pred_check
        _
      $region19: #{tucker_linear.1} parent=16 // pred_check_branch
        %235 = sbr.rel (0) target = $region21
      $region20: #{tucker_linear.1} parent=16 // pred_region
        // Predicated region
        $region22: #{tucker_linear.1} parent=20 // pred_check
          _
        $region23: #{tucker_linear.1} parent=20 // pred_check_branch
          %237 = sbr.rel (0) target = $region25
        $region24: #{tucker_linear.1} parent=20 // pred_region
          // Predicated region
          $region37: #{tucker_linear.1} parent=24 // pred_check
            _
          $region38: #{tucker_linear.1} parent=24 // pred_check_branch
            %255 = sbr.rel (0) target = $region40
          $region39: #{tucker_linear.1} parent=24 // pred_region
            loop: start=0, step=1, limit=1
            $region41: #{tucker_linear.1} parent=39 // loop_pre_header
              _
            $region42: #{tucker_linear.1} parent=39 // loop_header
              %s257 = sphi 0, %s261
              %p258 = scmp.ge.s32.totalorder %s257, 1
              %s262 = sphi [#allocation2], [#allocation2]
              %s263 = sphi %s3, %s3
            $region43: #{tucker_linear.1} parent=39 // loop_header_branch
              %260 = sbr.rel (%p258) target = $region47
            $region44: #{tucker_linear.1} parent=39 // loop_body
              %v264 = vld [vmem:[%s262] sm:$0xff]
              %265 = vst [vmem:[%s263] sm:$0xff] %v264
              %v266 = vld [vmem:[%s262 + $0x8] sm:$0xff]
              %267 = vst [vmem:[%s263 + $0x8] sm:$0xff] %v266
            $region45: #{tucker_linear.1} parent=39 // loop_footer
              %s261 = sadd.s32 1, %s257
            $region46: #{tucker_linear.1} parent=39 // loop_footer_branch
              %256 = sbr.rel target = $region42
            $region47: #{tucker_linear.1} parent=39 // loop_exit
              _
          $region40: #{tucker_linear.1} parent=24 // pred_fallthru
            _
          // Predicated region
          $region48: #{tucker_linear.1} parent=24 // pred_check
            _
          $region49: #{tucker_linear.1} parent=24 // pred_check_branch
            %269 = sbr.rel target = $region51
          $region50: #{tucker_linear.1} parent=24 // pred_region
            _
          $region51: #{tucker_linear.1} parent=24 // pred_fallthru
            _
        $region25: #{tucker_linear.1} parent=20 // pred_fallthru
          _
        // Predicated region
        $region26: #{tucker_linear.1} parent=20 // pred_check
          _
        $region27: #{tucker_linear.1} parent=20 // pred_check_branch
          %239 = sbr.rel target = $region29
        $region28: #{tucker_linear.1} parent=20 // pred_region
          %s241 = ssub.s32 256, 1
          loop: start=0, step=1, limit=1
          $region30: #{tucker_linear.1} parent=28 // loop_pre_header
            _
          $region31: #{tucker_linear.1} parent=28 // loop_header
            %s243 = sphi 0, %s247
            %p244 = scmp.ge.s32.totalorder %s243, 1
            %s248 = sphi [#allocation2], [#allocation2]
            %s249 = sphi %s3, %s3
          $region32: #{tucker_linear.1} parent=28 // loop_header_branch
            %246 = sbr.rel (%p244) target = $region36
          $region33: #{tucker_linear.1} parent=28 // loop_body
            %v250 = vld [vmem:[%s248] sm:%s241]
            %251 = vst [vmem:[%s249] sm:%s241] %v250
            %v252 = vld [vmem:[%s248 + $0x8] sm:%s241]
            %253 = vst [vmem:[%s249 + $0x8] sm:%s241] %v252
          $region34: #{tucker_linear.1} parent=28 // loop_footer
            %s247 = sadd.s32 1, %s243
          $region35: #{tucker_linear.1} parent=28 // loop_footer_branch
            %242 = sbr.rel target = $region31
          $region36: #{tucker_linear.1} parent=28 // loop_exit
            _
        $region29: #{tucker_linear.1} parent=20 // pred_fallthru
          _
      $region21: #{tucker_linear.1} parent=16 // pred_fallthru
        _
      %270 = vnop
    $region17: #{tucker_linear.1} parent=1 // pred_fallthru
      _
    // Predicated region
    $region52: #{tucker_linear.1} parent=1 // pred_check
      _
    $region53: #{tucker_linear.1} parent=1 // pred_check_branch
      %272 = sbr.rel (0) target = $region55
    $region54: #{tucker_linear.1} parent=1 // pred_region
      _
    $region55: #{tucker_linear.1} parent=1 // pred_fallthru
      _

</llo_original>
